<compile_context>
chip_gen: v7x
topology: tpu7x:2x2x1
jax: 0.10.0
libtpu: 0.0.40
codegen_flags: <defaults>
</compile_context>

<pallas_src>
import jax
import jax.numpy as jnp
from jax.experimental import pallas as pl
from jax.experimental.pallas import tpu as pltpu


def temporal_attention_kernel(x_ref, w_ref, b_ref, o_ref):
    # x_ref: (BB, T, H) VMEM, w_ref: (1, H) VMEM, b_ref: (1,) SMEM, o_ref: (BB, H)
    x = x_ref[...].astype(jnp.float32)                    # (BB, T, H)
    w = w_ref[...].astype(jnp.float32)                    # (1, H)
    b = b_ref[0]                                          # scalar from SMEM

    # Attention scores: contract over H (lane axis). Result is lane-major
    # (BB, T) so the subsequent softmax reduces densely over lanes.
    scores = jnp.sum(x * w[:, None, :], axis=-1) + b      # (BB, T)

    # Numerically stable softmax over the temporal axis.
    m = jnp.max(scores, axis=-1, keepdims=True)           # (BB, 1)
    e = jnp.exp(scores - m)                               # (BB, T)
    denom = jnp.sum(e, axis=-1, keepdims=True)            # (BB, 1)

    # Weighted sum over T (sublane reduce); fold softmax normalization into the
    # final (BB, H) slab using the EUP approximate reciprocal.
    attended = jnp.sum(x * e[:, :, None], axis=1)         # (BB, H)
    inv = pl.reciprocal(denom, approx=True)               # (BB, 1)
    o_ref[...] = (attended * inv).astype(o_ref.dtype)


def _pick_block_batch(B, T, H, itemsize, vmem_budget_bytes=16 * 1024 * 1024):
    """Choose the per-step batch block BB.

    - BB must divide B and its double-buffered (BB, T, H) slab must fit a
      conservative VMEM budget (safe even on v7x's 64 MiB).
    - Prefer BB a multiple of 8 (sublane-dense output stores); among those,
      prefer the largest that still leaves >= 2 grid steps (megacore on v7x).
    - If B is too small to tile cleanly, take the whole batch in one grid step
      so every block equals the full array dims (no partial tiles).
    """
    divisors = [d for d in range(1, B + 1) if B % d == 0]
    fits = [d for d in divisors if 2 * d * T * H * itemsize <= vmem_budget_bytes]
    if not fits:
        fits = [1]
    mult8 = [d for d in fits if d % 8 == 0]
    if mult8:
        two_step = [d for d in mult8 if B // d >= 2]
        return max(two_step) if two_step else max(mult8)
    return max(fits)


def temporal_attention(x, w, b):
    """x: (B, T, H), w: (1, H) (Linear(H,1) weight row), b: (1,) -> (B, H)."""
    B, T, H = x.shape
    BB = _pick_block_batch(B, T, H, jnp.dtype(x.dtype).itemsize)
    grid = (B // BB,)
    return pl.pallas_call(
        temporal_attention_kernel,
        out_shape=jax.ShapeDtypeStruct((B, H), x.dtype),
        grid_spec=pltpu.PrefetchScalarGridSpec(
            num_scalar_prefetch=0,
            grid=grid,
            in_specs=[
                pl.BlockSpec((BB, T, H), lambda i: (i, 0, 0)),
                pl.BlockSpec((1, H), lambda i: (0, 0)),
                pl.BlockSpec(memory_space=pltpu.MemorySpace.SMEM),
            ],
            out_specs=pl.BlockSpec((BB, H), lambda i: (i, 0)),
        ),
        compiler_params=pltpu.CompilerParams(
            dimension_semantics=("parallel",),
            vmem_limit_bytes=32 * 1024 * 1024,
        ),
    )(x, w, b)


def reference(x, w, b):
    scores = jnp.einsum("bth,h->bt", x, w[0]) + b[0]       # (B, T)
    p = jax.nn.softmax(scores, axis=-1)                    # softmax over T
    return jnp.einsum("bt,bth->bh", p, x)                  # (B, H)


if __name__ == "__main__":
    key = jax.random.PRNGKey(0)
    B, T, H = 2, 8, 32  # batch, seq, hidden_channels

    kx, kw, kb = jax.random.split(key, 3)
    x = jax.random.normal(kx, (B, T, H), dtype=jnp.float32)

    # nn.Linear(hidden_channels, 1): weight (1, H), bias (1,)
    # deterministic init (uniform in +/- 1/sqrt(H), like PyTorch default)
    bound = 1.0 / jnp.sqrt(jnp.float32(H))
    w = jax.random.uniform(kw, (1, H), minval=-bound, maxval=bound,
                           dtype=jnp.float32)
    b = jax.random.uniform(kb, (1,), minval=-bound, maxval=bound,
                           dtype=jnp.float32)

    out = temporal_attention(x, w, b)
    out = jax.block_until_ready(out)

    ref = reference(x, w, b)
    assert out.shape == (B, H)
    # Tolerance covers the EUP approx-reciprocal (~1e-4 relative error) used
    # for the softmax denominator.
    assert jnp.allclose(out, ref, atol=2e-3, rtol=2e-3), (
        f"mismatch: max abs err {jnp.max(jnp.abs(out - ref))}")

    print("KERNEL_OK")
</pallas_src>

<mosaic_0001>
module attributes {stable_mosaic.version = 11 : i64} {
  func.func @temporal_attention_kernel(%arg0: i32, %arg1: memref<2x8x32xf32, #tpu.memory_space<vmem>>, %arg2: memref<1x32xf32, #tpu.memory_space<vmem>>, %arg3: memref<1xf32, #tpu.memory_space<smem>>, %arg4: memref<2x32xf32, #tpu.memory_space<vmem>>) attributes {dimension_semantics = [#tpu.dimension_semantics<parallel>], iteration_bounds = array<i64: 1>, scalar_prefetch = 0 : i64, scratch_operands = 0 : i64, tpu.core_type = #tpu.core_type<tc>, window_params = [{transform_indices = @transform_0, window_bounds = array<i64: 2, 8, 32>}, {pipeline_mode = #tpu.pipeline_mode<synchronous>, transform_indices = @transform_1, window_bounds = array<i64: 1, 32>}, {transform_indices = @transform_2, window_bounds = array<i64: 1>}, {transform_indices = @transform_3, window_bounds = array<i64: 2, 32>}]} {
    %c0 = arith.constant 0 : index
    %c0_0 = arith.constant 0 : index
    %c0_1 = arith.constant 0 : index
    %0 = vector.load %arg1[%c0, %c0_0, %c0_1] : memref<2x8x32xf32, #tpu.memory_space<vmem>>, vector<2x8x32xf32>
    %c0_2 = arith.constant 0 : index
    %c0_3 = arith.constant 0 : index
    %1 = vector.load %arg2[%c0_2, %c0_3] : memref<1x32xf32, #tpu.memory_space<vmem>>, vector<1x32xf32>
    %c0_4 = arith.constant 0 : index
    %2 = memref.load %arg3[%c0_4] : memref<1xf32, #tpu.memory_space<smem>>
    %3 = vector.shape_cast %1 : vector<1x32xf32> to vector<1x1x32xf32>
    %4 = vector.broadcast %3 : vector<1x1x32xf32> to vector<2x8x32xf32>
    %5 = arith.mulf %0, %4 : vector<2x8x32xf32>
    %cst = arith.constant dense<0.000000e+00> : vector<2x8xf32>
    %6 = vector.multi_reduction <add>, %5, %cst [2] : vector<2x8x32xf32> to vector<2x8xf32>
    %7 = vector.broadcast %2 : f32 to vector<2x8xf32>
    %8 = arith.addf %6, %7 : vector<2x8xf32>
    %cst_5 = arith.constant dense<0xFF800000> : vector<2xf32>
    %9 = vector.multi_reduction <maximumf>, %8, %cst_5 [1] : vector<2x8xf32> to vector<2xf32>
    %10 = vector.shape_cast %9 : vector<2xf32> to vector<2x1xf32>
    %11 = vector.broadcast %10 : vector<2x1xf32> to vector<2x8xf32>
    %12 = arith.subf %8, %11 : vector<2x8xf32>
    %13 = math.exp %12 : vector<2x8xf32>
    %cst_6 = arith.constant dense<0.000000e+00> : vector<2xf32>
    %14 = vector.multi_reduction <add>, %13, %cst_6 [1] : vector<2x8xf32> to vector<2xf32>
    %15 = vector.shape_cast %14 : vector<2xf32> to vector<2x1xf32>
    %16 = vector.shape_cast %13 : vector<2x8xf32> to vector<2x8x1xf32>
    %17 = vector.broadcast %16 : vector<2x8x1xf32> to vector<2x8x32xf32>
    %18 = arith.mulf %0, %17 : vector<2x8x32xf32>
    %cst_7 = arith.constant dense<0.000000e+00> : vector<2x32xf32>
    %19 = vector.multi_reduction <add>, %18, %cst_7 [1] : vector<2x8x32xf32> to vector<2x32xf32>
    %20 = tpu.reciprocal %15 {approx = true} : vector<2x1xf32> -> vector<2x1xf32>
    %21 = vector.broadcast %20 : vector<2x1xf32> to vector<2x32xf32>
    %22 = arith.mulf %19, %21 : vector<2x32xf32>
    %c0_8 = arith.constant 0 : index
    %c0_9 = arith.constant 0 : index
    %23 = vector.load %arg4[%c0_8, %c0_9] : memref<2x32xf32, #tpu.memory_space<vmem>>, vector<2x32xf32>
    tpu.vector_store %arg4[%c0_8, %c0_9], %22 {strides = array<i32>} : memref<2x32xf32, #tpu.memory_space<vmem>>, vector<2x32xf32>,
    return
  }
  func.func @transform_0(%arg0: i32) -> (i32, i32, i32) {
    %c0_i32 = arith.constant 0 : i32
    %c0_i32_0 = arith.constant 0 : i32
    %c0_i32_1 = arith.constant 0 : i32
    return %arg0, %c0_i32, %c0_i32_0 : i32, i32, i32
  }
  func.func @transform_1(%arg0: i32) -> (i32, i32) {
    %c0_i32 = arith.constant 0 : i32
    %c0_i32_0 = arith.constant 0 : i32
    %c0_i32_1 = arith.constant 0 : i32
    return %c0_i32, %c0_i32_0 : i32, i32
  }
  func.func @transform_2(%arg0: i32) -> i32 {
    %c0_i32 = arith.constant 0 : i32
    %c0_i32_0 = arith.constant 0 : i32
    return %c0_i32 : i32
  }
  func.func @transform_3(%arg0: i32) -> (i32, i32) {
    %c0_i32 = arith.constant 0 : i32
    %c0_i32_0 = arith.constant 0 : i32
    return %arg0, %c0_i32 : i32, i32
  }
}

</mosaic_0001>

<llo_original>
// kernel: tpu_custom_call.1
$region0: #{tpu_custom_call.1}
  #allocation0 [shape = 'u32[]', space=smem, size = 0x4, offset = 0x4, fixed_abs, tag = 'smem constant byte address 0x4 - core index']
  #allocation1 [shape = 'u32[144,128]{1,0:T(1,128)}', space=vmem, size = 0x12000, scoped, tag = 'internal scratch']
  #allocation2 [shape = 'f32[1]{0:T(128)S(6)}', space=smem, size = 0x200, scoped, tag = 'scoped memory for tpu_custom_call.1']
  %s0 = inlined_call_operand.hbm [shape: f32[2,8,32], index: 0, kind: input, shape index: {}]
  %s1 = inlined_call_operand.vmem [shape: f32[1,32], index: 1, kind: input, shape index: {}]
  %s2 = inlined_call_operand.<no memory space> [shape: f32[1], index: 2, kind: input, shape index: {}]
  %s3 = inlined_call_operand.hbm [shape: f32[2,32], index: 3, kind: output, shape index: {}]
  %s4 = sld [smem:[#allocation0]]
  $region26: #{tpu_custom_call.1} parent=0
    _
  %s6 = ssub.s32 1, %s4
  %s7 = scalar_select 0, %s6, %s4
  %8 = sst [smem:[#allocation2]] %s2
  $region1: #{tpu_custom_call.1} parent=0
    #allocation3 [shape = 'u8[8192]{0}', space=vmem, size = 0x2000, scoped, tag = 'input window, operand 0, single buffered']
    #allocation4 [shape = 's32[1]{0}', space=sflag, size = 0x4, scoped, tag = 'scoped memory for tpu_custom_call.1']
    #allocation5 [shape = 's32[1]{0}', space=sflag, size = 0x4, scoped, tag = 'scoped memory for tpu_custom_call.1']
    #allocation6 [shape = 'u8[1024]{0}', space=vmem, size = 0x400, scoped, tag = 'output window, operand 0, single buffered']
    %9 = vsyncpa [#allocation4], 0
    %10 = vsyncpa [#allocation5], 0
    // Predicated region
    $region2: #{tpu_custom_call.1} parent=1 // pred_check
      _
    $region3: #{tpu_custom_call.1} parent=1 // pred_check_branch
      %12 = sbr.rel (0) target = $region5
    $region4: #{tpu_custom_call.1} parent=1 // pred_region
      %s14 = ssub.s32 256, 256
      %15 = vsyncadd [#allocation4], %s14
      %s16 = sshll.u32 [#allocation3], 4
      %s17 = int_to_ptr.vmem [resolvable:$true] %s16
      %22 = dma.hbm_to_vmem [thread:$0]  %s0, 256, %s17, [#allocation4], 128, 128, 8
    $region5: #{tpu_custom_call.1} parent=1 // pred_fallthru
      _
    // Predicated region
    $region6: #{tpu_custom_call.1} parent=1 // pred_check
      _
    $region7: #{tpu_custom_call.1} parent=1 // pred_check_branch
      %24 = sbr.rel (0) target = $region9
    $region8: #{tpu_custom_call.1} parent=1 // pred_region
      _
    $region9: #{tpu_custom_call.1} parent=1 // pred_fallthru
      _
    // Predicated region
    $region10: #{tpu_custom_call.1} parent=1 // pred_check
      _
    $region11: #{tpu_custom_call.1} parent=1 // pred_check_branch
      %26 = sbr.rel (0) target = $region13
    $region12: #{tpu_custom_call.1} parent=1 // pred_region
      _
    $region13: #{tpu_custom_call.1} parent=1 // pred_fallthru
      _
    // Predicated region
    $region14: #{tpu_custom_call.1} parent=1 // pred_check
      _
    $region15: #{tpu_custom_call.1} parent=1 // pred_check_branch
      %28 = sbr.rel (0) target = $region17
    $region16: #{tpu_custom_call.1} parent=1 // pred_region
      %29 = dma.done [#allocation4], 256
    $region17: #{tpu_custom_call.1} parent=1 // pred_fallthru
      _
    %v30 = vld [vmem:[#allocation3] sm:$0xff]
    %v31 = vld [vmem:[#allocation3 + $0x8] sm:$0xff]
    %v32 = vld [vmem:[%s1] sm:$0x1]
    %s33 = sld [smem:[#allocation2]]
    %v35 = vlaneseq
    %v36 = vshrl.u32 %v35, 7
    %v37 = vsub.s32 0, %v36
    %v38 = vrot.slane %v32, %v37
    %v40 = vmul.f32 %v30, %v38
    %v41 = vmul.f32 %v31, %v38
    %vm42 = vcmask 261120
    %v43 = vsel %vm42, %v40, 0.0
    %44 = vadd.xlane.f32.xlu0 %v43
    %v45 = vpop.xlane.xlu0 %44
    %v46 = vsel %vm42, %v41, 0.0
    %47 = vadd.xlane.f32.xlu0 %v46
    %v48 = vpop.xlane.xlu0 %47
    %v49 = vstv %s33
    %v50 = vadd.f32 %v45, %v49
    %v51 = vadd.f32 %v48, %v49
    %v54 = vlaneseq
    %v55 = vand.u32 %v54, 127
    %v56 = vlaneseq
    %v57 = vshrl.u32 %v56, 7
    %v58 = vsub.s32 %v55, %v57
    %v59 = vrot.slane %v50, %v58
    %v60 = vlaneseq
    %v61 = vshrl.u32 %v60, 7
    %v62 = vsub.s32 %v55, %v61
    %v63 = vrot.slane %v51, %v62
    %vm64 = vcmask 1041409
    %v65 = vsel %vm64, %v63, %v59
    %vm67 = vcmask 58368
    %v68 = vsel %vm67, %v65, -inf
    %69 = vmax.xlane.f32.xlu0 %v68
    %v70 = vpop.xlane.xlu0 %69
    %v72 = vlaneseq
    %v73 = vshrl.u32 %v72, 7
    %v74 = vsub.s32 0, %v73
    %v75 = vrot.slane %v70, %v74
    %v76 = vlaneseq
    %v77 = vshrl.u32 %v76, 7
    %v78 = vsub.s32 1, %v77
    %v79 = vrot.slane %v70, %v78
    %v82 = vsub.f32 %v50, %v75
    %v83 = vsub.f32 %v51, %v79
    %v84 = vmul.f32 %v82, 1.442695
    %v85 = vpow.pop %v84
    %v86 = vmul.f32 %v83, 1.442695
    %v87 = vpow.pop %v86
    %90 = vset.pattern.permute.xlu0 0
    %91 = vperm.xlu0 %90, %v85
    %v92 = vpop.permute.xlu0 %91
    %93 = vset.pattern.permute.xlu0 0
    %94 = vperm.xlu0 %93, %v87
    %v95 = vpop.permute.xlu0 %94
    %v96 = vlaneseq
    %v97 = vshrl.u32 %v96, 7
    %v98 = vsub.s32 %v55, %v97
    %v99 = vrot.slane %v92, %v98
    %v100 = vlaneseq
    %v101 = vshrl.u32 %v100, 7
    %v102 = vsub.s32 %v55, %v101
    %v103 = vrot.slane %v95, %v102
    %v104 = vsel %vm64, %v103, %v99
    %v106 = vsel %vm67, %v104, 0.0
    %107 = vadd.xlane.f32.xlu0 %v106
    %v108 = vpop.xlane.xlu0 %107
    %v111 = vmul.f32 %v30, %v92
    %v112 = vmul.f32 %v31, %v95
    %v113 = vsel %vm42, %v111, 0.0
    %v114 = vrot.slane %v113, 4
    %v115 = vadd.f32 %v113, %v114
    %v116 = vrot.slane %v115, 2
    %v117 = vadd.f32 %v115, %v116
    %v118 = vrot.slane %v117, 1
    %v119 = vadd.f32 %v117, %v118
    %v120 = vsel %vm42, %v112, 0.0
    %v121 = vrot.slane %v120, 4
    %v122 = vadd.f32 %v120, %v121
    %v123 = vrot.slane %v122, 2
    %v124 = vadd.f32 %v122, %v123
    %v125 = vrot.slane %v124, 1
    %v126 = vadd.f32 %v124, %v125
    %v127 = vrcp.pop %v108
    %v129 = vrot.slane %v127, 1
    %v132 = vmul.f32 %v119, %v127
    %v133 = vmul.f32 %v126, %v129
    %v136 = vrot.slane %v133, 7
    %v137 = vsel %vm64, %v136, %v132
    %vm139 = vcmask 254976
    %140 = vst.msk [vmem:[#allocation6] sm:$0x3] %vm139, %v137
    // Predicated region
    $region18: #{tpu_custom_call.1} parent=1 // pred_check
      _
    $region19: #{tpu_custom_call.1} parent=1 // pred_check_branch
      %142 = sbr.rel (0) target = $region21
    $region20: #{tpu_custom_call.1} parent=1 // pred_region
      %s144 = ssub.s32 32, 32
      %145 = vsyncadd [#allocation5], %s144
      %s147 = sshll.u32 [#allocation6], 4
      %s148 = int_to_ptr.vmem [resolvable:$true] %s147
      %150 = dma.vmem_to_hbm [thread:$0]  %s148, 32, %s3, [#allocation5]
    $region21: #{tpu_custom_call.1} parent=1 // pred_fallthru
      _
    // Predicated region
    $region22: #{tpu_custom_call.1} parent=1 // pred_check
      _
    $region23: #{tpu_custom_call.1} parent=1 // pred_check_branch
      %152 = sbr.rel (0) target = $region25
    $region24: #{tpu_custom_call.1} parent=1 // pred_region
      %153 = dma.done [#allocation5], 32
    $region25: #{tpu_custom_call.1} parent=1 // pred_fallthru
      _
    %154 = vsyncpa [#allocation4], 1
    %155 = vsyncpa [#allocation5], 1

</llo_original>
